<compile_context>
chip_gen: v5e
topology: v5e:2x2
jax: 0.10.0
libtpu: 0.0.40
codegen_flags: <defaults>
</compile_context>

<pallas_src>
import jax
import jax.numpy as jnp
from jax.experimental import pallas as pl
from jax.experimental.pallas import tpu as pltpu

HIDDEN = 128


def _round_up(n, m):
    return ((n + m - 1) // m) * m


def _mlp_kernel(x_ref, w1_ref, b1_ref, w2_ref, b2_ref, w3_ref, b3_ref, o_ref):
    # Layer 1: Linear + ReLU. Weights arrive pre-cast to bf16; x is cast per tile.
    # MXU accumulates in f32; bias-add / ReLU stay f32 on the VPU.
    x = x_ref[...].astype(jnp.bfloat16)
    h1 = jnp.dot(x, w1_ref[...], preferred_element_type=jnp.float32)
    h1 = jnp.maximum(h1 + b1_ref[...], 0.0)

    # Layer 2: Linear + ReLU.
    h2 = jnp.dot(h1.astype(jnp.bfloat16), w2_ref[...],
                 preferred_element_type=jnp.float32)
    h2 = jnp.maximum(h2 + b2_ref[...], 0.0)

    # Layer 3 (scalar reward head) on the MXU: the MXU is nearly idle (layer-1 K is
    # tiny, layer-2 is a single 128-wide matmul), so the "wasted" 255/256 columns are
    # free, while a VPU-mul + XLU lane-reduce would load the busier units (v6e/v7x
    # have only 2 XLUs). TODO(synk): on v5e the VPU/XLU head may win; measure there.
    out = jnp.dot(h2.astype(jnp.bfloat16), w3_ref[...],
                  preferred_element_type=jnp.float32) + b3_ref[...]

    o_ref[...] = out.astype(o_ref.dtype)


def _choose_block_b(B, D):
    """Rows per batch tile: ~1 MiB of x per tile, clamped, multiple of 128 when big."""
    target_bytes = 1 << 20
    rows = target_bytes // (D * 4)
    rows = max(512, min(rows, 8192))
    # Keep >= 2 batch tiles so v7x megacore can shard across both TensorCores.
    two_tile_cap = _round_up(max(-(-B // 2), 8), 128)
    rows = min(rows, two_tile_cap, _round_up(B, 8))
    rows = max(8, (rows // 8) * 8)
    if rows >= 128:
        rows = (rows // 128) * 128
    return rows


def _vmem_cap_bytes():
    try:
        return int(pltpu.get_tpu_info().vmem_capacity_bytes)
    except Exception:
        return 64 * 1024 * 1024  # conservative fallback (v7x per-TC capacity)


def reward_network_forward(x, params):
    """x: (B, input_dim) float32. params: w1 (D,128), b1 (1,128), w2 (128,128),
    b2 (1,128), w3 (128,1), b3 (1,1) — all float32. Returns (B, 1) float32."""
    B, D = x.shape
    H = params["w1"].shape[1]

    # One-time bf16 cast of the MXU weights (loop-invariant, resident in VMEM).
    w1 = params["w1"].astype(jnp.bfloat16)
    w2 = params["w2"].astype(jnp.bfloat16)
    w3 = params["w3"].astype(jnp.bfloat16)
    b1, b2, b3 = params["b1"], params["b2"], params["b3"]

    block_b = _choose_block_b(B, D)
    grid = (pl.cdiv(B, block_b),)

    # Weights/biases: whole-array blocks with constant index_map -> DMA'd once and
    # kept resident in VMEM across all batch tiles.
    def const_spec(shape):
        return pl.BlockSpec(shape, lambda i: tuple(0 for _ in shape))

    flops = 2 * B * (D * H + H * H + H)
    weight_bytes = (D * H + H * H + H) * 2 + (H + H + 1) * 4
    bytes_accessed = B * D * 4 + weight_bytes + B * 4

    # VMEM estimate: double-buffered x/out tiles + resident weights + f32/bf16
    # intermediates (h1, h2, casts) that live inside one kernel invocation.
    x_vmem = 2 * block_b * D * 4
    out_vmem = 2 * block_b * 4
    w_vmem = 2 * weight_bytes
    inter_vmem = block_b * (2 * D + 4 * H + 2 * H + 4 * H + 2 * H + 4)
    vmem_est = x_vmem + out_vmem + w_vmem + inter_vmem
    vmem_cap = int(0.85 * _vmem_cap_bytes())
    vmem_limit = int(min(vmem_cap, max(32 * 1024 * 1024, 2 * vmem_est)))

    out = pl.pallas_call(
        _mlp_kernel,
        out_shape=jax.ShapeDtypeStruct((B, 1), jnp.float32),
        grid=grid,
        in_specs=[
            pl.BlockSpec((block_b, D), lambda i: (i, 0)),   # x: batch-tiled
            const_spec((D, H)), const_spec((1, H)),          # w1 (bf16), b1 (f32)
            const_spec((H, H)), const_spec((1, H)),          # w2 (bf16), b2 (f32)
            const_spec((H, 1)), const_spec((1, 1)),          # w3 column (bf16), b3
        ],
        out_specs=pl.BlockSpec((block_b, 1), lambda i: (i, 0)),
        compiler_params=pltpu.CompilerParams(
            dimension_semantics=("parallel",),                # megacore on v7x
            vmem_limit_bytes=vmem_limit),
        cost_estimate=pl.CostEstimate(
            flops=flops, transcendentals=0, bytes_accessed=bytes_accessed),
    )(x, w1, b1, w2, b2, w3, b3)

    return out


def init_params(key, input_dim, hidden=HIDDEN):
    """Mimics PyTorch nn.Linear default init U(-1/sqrt(fan_in), 1/sqrt(fan_in))."""
    ks = jax.random.split(key, 6)

    def lin(kw, kb, fan_in, fan_out):
        bound = 1.0 / jnp.sqrt(fan_in)
        w = jax.random.uniform(kw, (fan_in, fan_out), jnp.float32, -bound, bound)
        b = jax.random.uniform(kb, (1, fan_out), jnp.float32, -bound, bound)
        return w, b

    w1, b1 = lin(ks[0], ks[1], input_dim, hidden)
    w2, b2 = lin(ks[2], ks[3], hidden, hidden)
    w3, b3 = lin(ks[4], ks[5], hidden, 1)            # (hidden, 1), (1, 1)
    return {"w1": w1, "b1": b1, "w2": w2, "b2": b2, "w3": w3, "b3": b3}


def reward_network_ref(x, p):
    h1 = jnp.maximum(x @ p["w1"] + p["b1"], 0.0)
    h2 = jnp.maximum(h1 @ p["w2"] + p["b2"], 0.0)
    return h2 @ p["w3"] + p["b3"]


if __name__ == "__main__":
    key = jax.random.PRNGKey(0)
    k_params, k_x1, k_x2 = jax.random.split(key, 3)

    input_dim = 16
    params = init_params(k_params, input_dim)

    # Small case (single tile).
    B1 = 8
    x1 = jax.random.normal(k_x1, (B1, input_dim), jnp.float32)
    out1 = jax.block_until_ready(reward_network_forward(x1, params))
    ref1 = reward_network_ref(x1, params)
    assert out1.shape == (B1, 1)
    # bf16 at the MXU boundary -> compare against the f32 reference with loose tolerance.
    assert jnp.allclose(out1, ref1, atol=5e-2, rtol=5e-2), "Pallas output mismatch (small batch)"

    # Gridded + ragged-last-block case (exercises batch tiling and OOB-masked writeback).
    B2 = 600
    x2 = jax.random.normal(k_x2, (B2, input_dim), jnp.float32)
    out2 = jax.block_until_ready(reward_network_forward(x2, params))
    ref2 = reward_network_ref(x2, params)
    assert out2.shape == (B2, 1)
    assert jnp.allclose(out2, ref2, atol=5e-2, rtol=5e-2), "Pallas output mismatch (gridded batch)"
    assert bool(jnp.all(jnp.isfinite(out2))), "Non-finite values leaked from ragged padding"

    print("KERNEL_OK")
</pallas_src>

<mosaic_0001>
module attributes {stable_mosaic.version = 11 : i64} {
  func.func @_mlp_kernel(%arg0: i32, %arg1: memref<8x16xf32, #tpu.memory_space<vmem>>, %arg2: memref<16x128xbf16, #tpu.memory_space<vmem>>, %arg3: memref<1x128xf32, #tpu.memory_space<vmem>>, %arg4: memref<128x128xbf16, #tpu.memory_space<vmem>>, %arg5: memref<1x128xf32, #tpu.memory_space<vmem>>, %arg6: memref<128x1xbf16, #tpu.memory_space<vmem>>, %arg7: memref<1x1xf32, #tpu.memory_space<vmem>>, %arg8: memref<8x1xf32, #tpu.memory_space<vmem>>) attributes {dimension_semantics = [#tpu.dimension_semantics<parallel>], iteration_bounds = array<i64: 1>, scalar_prefetch = 0 : i64, scratch_operands = 0 : i64, tpu.core_type = #tpu.core_type<tc>, window_params = [{transform_indices = @transform_0, window_bounds = array<i64: 8, 16>}, {pipeline_mode = #tpu.pipeline_mode<synchronous>, transform_indices = @transform_1, window_bounds = array<i64: 16, 128>}, {pipeline_mode = #tpu.pipeline_mode<synchronous>, transform_indices = @transform_2, window_bounds = array<i64: 1, 128>}, {pipeline_mode = #tpu.pipeline_mode<synchronous>, transform_indices = @transform_3, window_bounds = array<i64: 128, 128>}, {pipeline_mode = #tpu.pipeline_mode<synchronous>, transform_indices = @transform_4, window_bounds = array<i64: 1, 128>}, {pipeline_mode = #tpu.pipeline_mode<synchronous>, transform_indices = @transform_5, window_bounds = array<i64: 128, 1>}, {pipeline_mode = #tpu.pipeline_mode<synchronous>, transform_indices = @transform_6, window_bounds = array<i64: 1, 1>}, {transform_indices = @transform_7, window_bounds = array<i64: 8, 1>}]} {
    %c0 = arith.constant 0 : index
    %c0_0 = arith.constant 0 : index
    %0 = vector.load %arg1[%c0, %c0_0] : memref<8x16xf32, #tpu.memory_space<vmem>>, vector<8x16xf32>
    %1 = arith.truncf %0 : vector<8x16xf32> to vector<8x16xbf16>
    %c0_1 = arith.constant 0 : index
    %c0_2 = arith.constant 0 : index
    %2 = vector.load %arg2[%c0_1, %c0_2] : memref<16x128xbf16, #tpu.memory_space<vmem>>, vector<16x128xbf16>
    %cst = arith.constant dense<0.000000e+00> : vector<8x128xf32>
    %3 = tpu.matmul %1, %2, %cst {dimension_numbers = #tpu.dot_dimension_numbers<[1], [0], [0], [1], [0, 0, 1, 1], [], []>} : vector<8x16xbf16>, vector<16x128xbf16>, vector<8x128xf32> -> vector<8x128xf32>
    %c0_3 = arith.constant 0 : index
    %c0_4 = arith.constant 0 : index
    %4 = vector.load %arg3[%c0_3, %c0_4] : memref<1x128xf32, #tpu.memory_space<vmem>>, vector<1x128xf32>
    %5 = vector.broadcast %4 : vector<1x128xf32> to vector<8x128xf32>
    %6 = arith.addf %3, %5 : vector<8x128xf32>
    %cst_5 = arith.constant 0.000000e+00 : f32
    %7 = vector.broadcast %cst_5 : f32 to vector<8x128xf32>
    %8 = arith.maximumf %6, %7 : vector<8x128xf32>
    %9 = arith.truncf %8 : vector<8x128xf32> to vector<8x128xbf16>
    %c0_6 = arith.constant 0 : index
    %c0_7 = arith.constant 0 : index
    %10 = vector.load %arg4[%c0_6, %c0_7] : memref<128x128xbf16, #tpu.memory_space<vmem>>, vector<128x128xbf16>
    %cst_8 = arith.constant dense<0.000000e+00> : vector<8x128xf32>
    %11 = tpu.matmul %9, %10, %cst_8 {dimension_numbers = #tpu.dot_dimension_numbers<[1], [0], [0], [1], [0, 0, 1, 1], [], []>} : vector<8x128xbf16>, vector<128x128xbf16>, vector<8x128xf32> -> vector<8x128xf32>
    %c0_9 = arith.constant 0 : index
    %c0_10 = arith.constant 0 : index
    %12 = vector.load %arg5[%c0_9, %c0_10] : memref<1x128xf32, #tpu.memory_space<vmem>>, vector<1x128xf32>
    %13 = vector.broadcast %12 : vector<1x128xf32> to vector<8x128xf32>
    %14 = arith.addf %11, %13 : vector<8x128xf32>
    %cst_11 = arith.constant 0.000000e+00 : f32
    %15 = vector.broadcast %cst_11 : f32 to vector<8x128xf32>
    %16 = arith.maximumf %14, %15 : vector<8x128xf32>
    %17 = arith.truncf %16 : vector<8x128xf32> to vector<8x128xbf16>
    %c0_12 = arith.constant 0 : index
    %c0_13 = arith.constant 0 : index
    %18 = vector.load %arg6[%c0_12, %c0_13] : memref<128x1xbf16, #tpu.memory_space<vmem>>, vector<128x1xbf16>
    %cst_14 = arith.constant dense<0.000000e+00> : vector<8x1xf32>
    %19 = tpu.matmul %17, %18, %cst_14 {dimension_numbers = #tpu.dot_dimension_numbers<[1], [0], [0], [1], [0, 0, 1, 1], [], []>} : vector<8x128xbf16>, vector<128x1xbf16>, vector<8x1xf32> -> vector<8x1xf32>
    %c0_15 = arith.constant 0 : index
    %c0_16 = arith.constant 0 : index
    %20 = vector.load %arg7[%c0_15, %c0_16] : memref<1x1xf32, #tpu.memory_space<vmem>>, vector<1x1xf32>
    %21 = vector.broadcast %20 : vector<1x1xf32> to vector<8x1xf32>
    %22 = arith.addf %19, %21 : vector<8x1xf32>
    %c0_17 = arith.constant 0 : index
    %c0_18 = arith.constant 0 : index
    %23 = vector.load %arg8[%c0_17, %c0_18] : memref<8x1xf32, #tpu.memory_space<vmem>>, vector<8x1xf32>
    tpu.vector_store %arg8[%c0_17, %c0_18], %22 {strides = array<i32>} : memref<8x1xf32, #tpu.memory_space<vmem>>, vector<8x1xf32>,
    return
  }
  func.func @transform_0(%arg0: i32) -> (i32, i32) {
    %c0_i32 = arith.constant 0 : i32
    %c0_i32_0 = arith.constant 0 : i32
    return %arg0, %c0_i32 : i32, i32
  }
  func.func @transform_1(%arg0: i32) -> (i32, i32) {
    %c0_i32 = arith.constant 0 : i32
    %c0_i32_0 = arith.constant 0 : i32
    %c0_i32_1 = arith.constant 0 : i32
    return %c0_i32, %c0_i32_0 : i32, i32
  }
  func.func @transform_2(%arg0: i32) -> (i32, i32) {
    %c0_i32 = arith.constant 0 : i32
    %c0_i32_0 = arith.constant 0 : i32
    %c0_i32_1 = arith.constant 0 : i32
    return %c0_i32, %c0_i32_0 : i32, i32
  }
  func.func @transform_3(%arg0: i32) -> (i32, i32) {
    %c0_i32 = arith.constant 0 : i32
    %c0_i32_0 = arith.constant 0 : i32
    %c0_i32_1 = arith.constant 0 : i32
    return %c0_i32, %c0_i32_0 : i32, i32
  }
  func.func @transform_4(%arg0: i32) -> (i32, i32) {
    %c0_i32 = arith.constant 0 : i32
    %c0_i32_0 = arith.constant 0 : i32
    %c0_i32_1 = arith.constant 0 : i32
    return %c0_i32, %c0_i32_0 : i32, i32
  }
  func.func @transform_5(%arg0: i32) -> (i32, i32) {
    %c0_i32 = arith.constant 0 : i32
    %c0_i32_0 = arith.constant 0 : i32
    %c0_i32_1 = arith.constant 0 : i32
    return %c0_i32, %c0_i32_0 : i32, i32
  }
  func.func @transform_6(%arg0: i32) -> (i32, i32) {
    %c0_i32 = arith.constant 0 : i32
    %c0_i32_0 = arith.constant 0 : i32
    %c0_i32_1 = arith.constant 0 : i32
    return %c0_i32, %c0_i32_0 : i32, i32
  }
  func.func @transform_7(%arg0: i32) -> (i32, i32) {
    %c0_i32 = arith.constant 0 : i32
    %c0_i32_0 = arith.constant 0 : i32
    return %arg0, %c0_i32 : i32, i32
  }
}

</mosaic_0001>

<llo_original>
// kernel: tpu_custom_call.1
$region0: #{tpu_custom_call.1}
  #allocation0 [shape = 'u32[]', space=smem, size = 0x4, offset = 0x4, fixed_abs, tag = 'smem constant byte address 0x4 - core index']
  #allocation1 [shape = 'u32[72,128]{1,0:T(1,128)}', space=vmem, size = 0x9000, scoped, tag = 'internal scratch']
  #allocation2 [shape = 'f32[1,1]{1,0:T(1,128)S(1)}', space=vmem, size = 0x200, scoped, tag = 'scoped memory for tpu_custom_call.1']
  %s0 = inlined_call_operand.hbm [shape: f32[8,16], index: 0, kind: input, shape index: {}]
  %s1 = inlined_call_operand.hbm [shape: bf16[16,128], index: 1, kind: input, shape index: {}]
  %s2 = inlined_call_operand.vmem [shape: f32[1,128], index: 2, kind: input, shape index: {}]
  %s3 = inlined_call_operand.vmem [shape: bf16[128,128], index: 3, kind: input, shape index: {}]
  %s4 = inlined_call_operand.vmem [shape: f32[1,128], index: 4, kind: input, shape index: {}]
  %s5 = inlined_call_operand.vmem [shape: bf16[128,1], index: 5, kind: input, shape index: {}]
  %s6 = inlined_call_operand.<no memory space> [shape: f32[1,1], index: 6, kind: input, shape index: {}]
  %s7 = inlined_call_operand.vmem [shape: f32[8,1], index: 7, kind: output, shape index: {}]
  %s8 = sld [smem:[#allocation0]]
  $region46: #{tpu_custom_call.1} parent=0
    _
  %s10 = ssub.s32 1, %s8
  %s11 = scalar_select 0, %s10, %s8
  %v12 = vstv %s6
  %13 = vst [vmem:[#allocation2] sm:$0x1] %v12
  $region1: #{tpu_custom_call.1} parent=0
    #allocation3 [shape = 'u8[4096]{0}', space=vmem, size = 0x1000, scoped, tag = 'input window, operand 0, single buffered']
    #allocation4 [shape = 's32[1]{0}', space=sflag, size = 0x4, scoped, tag = 'scoped memory for tpu_custom_call.1']
    #allocation5 [shape = 'u8[4096]{0}', space=vmem, size = 0x1000, scoped, tag = 'input window, operand 1, single buffered']
    #allocation6 [shape = 's32[1]{0}', space=sflag, size = 0x4, scoped, tag = 'scoped memory for tpu_custom_call.1']
    %14 = vsyncpa [#allocation4], 0
    %15 = vsyncpa [#allocation6], 0
    // Predicated region
    $region2: #{tpu_custom_call.1} parent=1 // pred_check
      _
    $region3: #{tpu_custom_call.1} parent=1 // pred_check_branch
      %17 = sbr.rel (0) target = $region5
    $region4: #{tpu_custom_call.1} parent=1 // pred_region
      %19 = vsyncadd [#allocation4], 0
      %s21 = sshll.u32 %s0, 4
      %s22 = int_to_ptr.hbm [resolvable:$true] %s21
      %s23 = sshll.u32 [#allocation3], 4
      %s24 = int_to_ptr.vmem [resolvable:$true] %s23
      %26 = dma.hbm_to_vmem [thread:$0]  %s22, 128, %s24, [#allocation4]
    $region5: #{tpu_custom_call.1} parent=1 // pred_fallthru
      _
    // Predicated region
    $region6: #{tpu_custom_call.1} parent=1 // pred_check
      _
    $region7: #{tpu_custom_call.1} parent=1 // pred_check_branch
      %28 = sbr.rel (0) target = $region9
    $region8: #{tpu_custom_call.1} parent=1 // pred_region
      %30 = vsyncadd [#allocation6], 0
      %s31 = sshll.u32 %s1, 4
      %s32 = int_to_ptr.hbm [resolvable:$true] %s31
      %s33 = sshll.u32 [#allocation5], 4
      %s34 = int_to_ptr.vmem [resolvable:$true] %s33
      %39 = dma.hbm_to_vmem [thread:$0]  %s32, 128, %s34, [#allocation6], 64, 64, 4
    $region9: #{tpu_custom_call.1} parent=1 // pred_fallthru
      _
    // Predicated region
    $region10: #{tpu_custom_call.1} parent=1 // pred_check
      _
    $region11: #{tpu_custom_call.1} parent=1 // pred_check_branch
      %41 = sbr.rel (0) target = $region13
    $region12: #{tpu_custom_call.1} parent=1 // pred_region
      _
    $region13: #{tpu_custom_call.1} parent=1 // pred_fallthru
      _
    // Predicated region
    $region14: #{tpu_custom_call.1} parent=1 // pred_check
      _
    $region15: #{tpu_custom_call.1} parent=1 // pred_check_branch
      %43 = sbr.rel (0) target = $region17
    $region16: #{tpu_custom_call.1} parent=1 // pred_region
      _
    $region17: #{tpu_custom_call.1} parent=1 // pred_fallthru
      _
    // Predicated region
    $region18: #{tpu_custom_call.1} parent=1 // pred_check
      _
    $region19: #{tpu_custom_call.1} parent=1 // pred_check_branch
      %45 = sbr.rel (0) target = $region21
    $region20: #{tpu_custom_call.1} parent=1 // pred_region
      _
    $region21: #{tpu_custom_call.1} parent=1 // pred_fallthru
      _
    // Predicated region
    $region22: #{tpu_custom_call.1} parent=1 // pred_check
      _
    $region23: #{tpu_custom_call.1} parent=1 // pred_check_branch
      %47 = sbr.rel (0) target = $region25
    $region24: #{tpu_custom_call.1} parent=1 // pred_region
      _
    $region25: #{tpu_custom_call.1} parent=1 // pred_fallthru
      _
    // Predicated region
    $region26: #{tpu_custom_call.1} parent=1 // pred_check
      _
    $region27: #{tpu_custom_call.1} parent=1 // pred_check_branch
      %49 = sbr.rel (0) target = $region29
    $region28: #{tpu_custom_call.1} parent=1 // pred_region
      _
    $region29: #{tpu_custom_call.1} parent=1 // pred_fallthru
      _
    // Predicated region
    $region30: #{tpu_custom_call.1} parent=1 // pred_check
      _
    $region31: #{tpu_custom_call.1} parent=1 // pred_check_branch
      %51 = sbr.rel (0) target = $region33
    $region32: #{tpu_custom_call.1} parent=1 // pred_region
      %53 = dma.done [#allocation4], 128
    $region33: #{tpu_custom_call.1} parent=1 // pred_fallthru
      _
    // Predicated region
    $region34: #{tpu_custom_call.1} parent=1 // pred_check
      _
    $region35: #{tpu_custom_call.1} parent=1 // pred_check_branch
      %55 = sbr.rel (0) target = $region37
    $region36: #{tpu_custom_call.1} parent=1 // pred_region
      %57 = dma.done [#allocation6], 128
    $region37: #{tpu_custom_call.1} parent=1 // pred_fallthru
      _
    %v59 = vld [vmem:[#allocation3] sm:$0xff]
    %v60 = vpack.c.bf16 %v59, %v59
    %v61 = vld [vmem:[#allocation5] sm:$0xf]
    %v62 = vld [vmem:[#allocation5 + $0x4] sm:$0xf]
    %v63 = vld [vmem:[%s2] sm:$0x1]
    %v65 = vperm.slane %v63, 0
    %v69 = vunpack.c.l.b16 %v61
    %v70 = vunpack.c.l.b16 %v62
    %v71 = vpack.c.b16 %v70, %v69
    %vm73 = vcmask 130048
    %v75 = vsel %vm73, %v60, 0
    %77 = vmatpush.bf16.msra.mxu0 0
    %78 = vmatpush.bf16.msra.mxu0 0
    %79 = vmatpush.bf16.msra.mxu0 0
    %80 = vmatpush.bf16.msra.mxu0 0
    %81 = vmatpush.bf16.msra.mxu0 0
    %82 = vmatpush.bf16.msra.mxu0 0
    %83 = vmatpush.bf16.msra.mxu0 0
    %84 = vmatpush.bf16.msra.mxu0 %v71
    %85 = vmatmul.bf16.gmra.mxu0 %v75
    %v86 = vpop.f32.mrf.mxu0
    %v87 = vadd.f32 %v65, %v86
    %v88 = vpop.f32.mrf.mxu0
    %89 = vdwg.mxu0
    %v90 = vmax.f32 %v87, 0.0
    %v91 = vpack.c.bf16 %v90, %v90
    %v92 = vld [vmem:[%s3] sm:$0xf]
    %v93 = vld [vmem:[%s3 + $0x4] sm:$0xf]
    %v94 = vld [vmem:[%s3 + $0x8] sm:$0xf]
    %v95 = vld [vmem:[%s3 + $0xc] sm:$0xf]
    %v96 = vld [vmem:[%s3 + $0x10] sm:$0xf]
    %v97 = vld [vmem:[%s3 + $0x14] sm:$0xf]
    %v98 = vld [vmem:[%s3 + $0x18] sm:$0xf]
    %v99 = vld [vmem:[%s3 + $0x1c] sm:$0xf]
    %v100 = vld [vmem:[%s3 + $0x20] sm:$0xf]
    %v101 = vld [vmem:[%s3 + $0x24] sm:$0xf]
    %v102 = vld [vmem:[%s3 + $0x28] sm:$0xf]
    %v103 = vld [vmem:[%s3 + $0x2c] sm:$0xf]
    %v104 = vld [vmem:[%s3 + $0x30] sm:$0xf]
    %v105 = vld [vmem:[%s3 + $0x34] sm:$0xf]
    %v106 = vld [vmem:[%s3 + $0x38] sm:$0xf]
    %v107 = vld [vmem:[%s3 + $0x3c] sm:$0xf]
    %v108 = vld [vmem:[%s4] sm:$0x1]
    %v110 = vperm.slane %v108, 0
    %v128 = vunpack.c.l.b16 %v92
    %v129 = vunpack.c.l.b16 %v93
    %v130 = vunpack.c.l.b16 %v94
    %v131 = vunpack.c.l.b16 %v95
    %v132 = vunpack.c.l.b16 %v96
    %v133 = vunpack.c.l.b16 %v97
    %v134 = vunpack.c.l.b16 %v98
    %v135 = vunpack.c.l.b16 %v99
    %v136 = vunpack.c.l.b16 %v100
    %v137 = vunpack.c.l.b16 %v101
    %v138 = vunpack.c.l.b16 %v102
    %v139 = vunpack.c.l.b16 %v103
    %v140 = vunpack.c.l.b16 %v104
    %v141 = vunpack.c.l.b16 %v105
    %v142 = vunpack.c.l.b16 %v106
    %v143 = vunpack.c.l.b16 %v107
    %v144 = vpack.c.b16 %v129, %v128
    %v145 = vpack.c.b16 %v131, %v130
    %v146 = vpack.c.b16 %v133, %v132
    %v147 = vpack.c.b16 %v135, %v134
    %v148 = vpack.c.b16 %v137, %v136
    %v149 = vpack.c.b16 %v139, %v138
    %v150 = vpack.c.b16 %v141, %v140
    %v151 = vpack.c.b16 %v143, %v142
    %160 = vmatpush.bf16.msra.mxu0 %v151
    %161 = vmatpush.bf16.msra.mxu0 %v150
    %162 = vmatpush.bf16.msra.mxu0 %v149
    %163 = vmatpush.bf16.msra.mxu0 %v148
    %164 = vmatpush.bf16.msra.mxu0 %v147
    %165 = vmatpush.bf16.msra.mxu0 %v146
    %166 = vmatpush.bf16.msra.mxu0 %v145
    %167 = vmatpush.bf16.msra.mxu0 %v144
    %168 = vmatmul.bf16.gmra.mxu0 %v91
    %v169 = vpop.f32.mrf.mxu0
    %v170 = vadd.f32 %v110, %v169
    %v171 = vpop.f32.mrf.mxu0
    %172 = vdwg.mxu0
    %v173 = vmax.f32 %v170, 0.0
    %v174 = vpack.c.bf16 %v173, %v173
    %v175 = vld [vmem:[%s5] sm:$0xf]
    %v176 = vld [vmem:[%s5 + $0x4] sm:$0xf]
    %v177 = vld [vmem:[%s5 + $0x8] sm:$0xf]
    %v178 = vld [vmem:[%s5 + $0xc] sm:$0xf]
    %v179 = vld [vmem:[%s5 + $0x10] sm:$0xf]
    %v180 = vld [vmem:[%s5 + $0x14] sm:$0xf]
    %v181 = vld [vmem:[%s5 + $0x18] sm:$0xf]
    %v182 = vld [vmem:[%s5 + $0x1c] sm:$0xf]
    %v183 = vld [vmem:[%s5 + $0x20] sm:$0xf]
    %v184 = vld [vmem:[%s5 + $0x24] sm:$0xf]
    %v185 = vld [vmem:[%s5 + $0x28] sm:$0xf]
    %v186 = vld [vmem:[%s5 + $0x2c] sm:$0xf]
    %v187 = vld [vmem:[%s5 + $0x30] sm:$0xf]
    %v188 = vld [vmem:[%s5 + $0x34] sm:$0xf]
    %v189 = vld [vmem:[%s5 + $0x38] sm:$0xf]
    %v190 = vld [vmem:[%s5 + $0x3c] sm:$0xf]
    %v191 = vld [vmem:[#allocation2] sm:$0x1]
    %v193 = vperm.slane %v191, 0
    %v211 = vunpack.c.l.b16 %v175
    %v212 = vunpack.c.l.b16 %v176
    %v213 = vunpack.c.l.b16 %v177
    %v214 = vunpack.c.l.b16 %v178
    %v215 = vunpack.c.l.b16 %v179
    %v216 = vunpack.c.l.b16 %v180
    %v217 = vunpack.c.l.b16 %v181
    %v218 = vunpack.c.l.b16 %v182
    %v219 = vunpack.c.l.b16 %v183
    %v220 = vunpack.c.l.b16 %v184
    %v221 = vunpack.c.l.b16 %v185
    %v222 = vunpack.c.l.b16 %v186
    %v223 = vunpack.c.l.b16 %v187
    %v224 = vunpack.c.l.b16 %v188
    %v225 = vunpack.c.l.b16 %v189
    %v226 = vunpack.c.l.b16 %v190
    %v227 = vpack.c.b16 %v212, %v211
    %v228 = vpack.c.b16 %v214, %v213
    %v229 = vpack.c.b16 %v216, %v215
    %v230 = vpack.c.b16 %v218, %v217
    %v231 = vpack.c.b16 %v220, %v219
    %v232 = vpack.c.b16 %v222, %v221
    %v233 = vpack.c.b16 %v224, %v223
    %v234 = vpack.c.b16 %v226, %v225
    %243 = vmatpush.bf16.msra.mxu0 %v234
    %244 = vmatpush.bf16.msra.mxu0 %v233
    %245 = vmatpush.bf16.msra.mxu0 %v232
    %246 = vmatpush.bf16.msra.mxu0 %v231
    %247 = vmatpush.bf16.msra.mxu0 %v230
    %248 = vmatpush.bf16.msra.mxu0 %v229
    %249 = vmatpush.bf16.msra.mxu0 %v228
    %250 = vmatpush.bf16.msra.mxu0 %v227
    %251 = vmatmul.bf16.gmra.mxu0 %v174
    %v252 = vpop.f32.mrf.mxu0
    %v253 = vadd.f32 %v193, %v252
    %v254 = vpop.f32.mrf.mxu0
    %255 = vdwg.mxu0
    %vm256 = vcmask 7168
    %257 = vst.msk [vmem:[%s7] sm:$0xff] %vm256, %v253
    // Predicated region
    $region38: #{tpu_custom_call.1} parent=1 // pred_check
      _
    $region39: #{tpu_custom_call.1} parent=1 // pred_check_branch
      %259 = sbr.rel (0) target = $region41
    $region40: #{tpu_custom_call.1} parent=1 // pred_region
      _
    $region41: #{tpu_custom_call.1} parent=1 // pred_fallthru
      _
    // Predicated region
    $region42: #{tpu_custom_call.1} parent=1 // pred_check
      _
    $region43: #{tpu_custom_call.1} parent=1 // pred_check_branch
      %261 = sbr.rel (0) target = $region45
    $region44: #{tpu_custom_call.1} parent=1 // pred_region
      _
    $region45: #{tpu_custom_call.1} parent=1 // pred_fallthru
      _
    %262 = vsyncpa [#allocation4], 1
    %263 = vsyncpa [#allocation6], 1

</llo_original>
